<compile_context>
chip_gen: v6e
topology: v6e:2x2x1
jax: 0.10.0
libtpu: 0.0.40
codegen_flags: <defaults>
</compile_context>

<pallas_src>
import functools
import math

import jax
import jax.numpy as jnp
from jax.experimental import pallas as pl
from jax.experimental.pallas import tpu as pltpu

_EPS = 1e-5
_VMEM_LIMIT = 32 * 1024 * 1024          # safe scoped-VMEM setting on v5e/v6e/v7x
_MXU_DTYPE = jnp.bfloat16
_STATS_SPLIT = 2                        # shard pass-1 reduction across v7x's 2 TCs


def _round_up(a, b):
    return ((a + b - 1) // b) * b


def _pick_row_tile(n, in_dim, out_dim, budget_bytes):
    """Largest row tile (multiple of 8) whose double-buffered f32 x/out tiles
    fit in ~half the VMEM budget; capped at 4096 to bound tail padding."""
    per_row = 2 * (in_dim * 4 + out_dim * 4)      # double-buffered x + out, f32
    cap = max(8, (budget_bytes // 2) // per_row)
    cap = min(cap, 4096)
    cap = (cap // 8) * 8
    return min(_round_up(n, 8), cap)


def _fused_kernel(x_ref, wt_ref, gamma_ref, beta_ref, o_ref,
                  sum_ref, sumsq_ref, *, inv_n, tile_n):
    """Single pass: y = xW tiles kept VMEM-resident in o_ref, batch stats in
    scratch, BatchNorm + affine + ReLU applied in place on the last step."""
    i = pl.program_id(0)

    @pl.when(i == 0)
    def _init():
        sum_ref[...] = jnp.zeros_like(sum_ref)
        sumsq_ref[...] = jnp.zeros_like(sumsq_ref)

    # bf16 MXU operands (cast in-kernel), f32 accumulation.
    y = jnp.dot(x_ref[...].astype(_MXU_DTYPE), wt_ref[...],
                preferred_element_type=jnp.float32)

    sum_ref[...] += jnp.sum(y, axis=0, keepdims=True)
    sumsq_ref[...] += jnp.sum(y * y, axis=0, keepdims=True)

    off = pl.multiple_of(i * tile_n, tile_n)
    o_ref[pl.ds(off, tile_n), :] = y

    @pl.when(i == pl.num_programs(0) - 1)
    def _finalize():
        mean = sum_ref[...] * inv_n
        var = jnp.maximum(sumsq_ref[...] * inv_n - mean * mean, 0.0)
        scale = jax.lax.rsqrt(var + _EPS) * gamma_ref[...]
        shift = beta_ref[...] - mean * scale
        o_ref[...] = jnp.maximum(o_ref[...] * scale + shift, 0.0)


def _stats_kernel(x_ref, wt_ref, sum_ref, sumsq_ref):
    """Fallback pass 1: per-core partial sum / sum-of-squares of y = xW."""
    @pl.when(pl.program_id(1) == 0)
    def _init():
        sum_ref[...] = jnp.zeros_like(sum_ref)
        sumsq_ref[...] = jnp.zeros_like(sumsq_ref)

    y = jnp.dot(x_ref[...].astype(_MXU_DTYPE), wt_ref[...],
                preferred_element_type=jnp.float32)
    sum_ref[...] += jnp.sum(y, axis=0, keepdims=True)
    sumsq_ref[...] += jnp.sum(y * y, axis=0, keepdims=True)


def _normalize_kernel(x_ref, wt_ref, scale_ref, shift_ref, o_ref):
    """Fallback pass 2: y = xW, fused (pre-hoisted) scale/shift + ReLU."""
    y = jnp.dot(x_ref[...].astype(_MXU_DTYPE), wt_ref[...],
                preferred_element_type=jnp.float32)
    o_ref[...] = jnp.maximum(y * scale_ref[...] + shift_ref[...], 0.0)


def reduce_node_attribute_dimensions(x, weight, bias, gamma, beta):
    """x: (N, in_dim) f32; weight: (out_dim, in_dim) PyTorch layout;
    bias/gamma/beta: (out_dim,). Returns (N, out_dim) f32.

    The Linear bias cancels exactly under BatchNorm's mean subtraction, so it
    is not used in the compute."""
    del bias
    n, in_dim = x.shape
    out_dim = weight.shape[0]

    wt = jnp.transpose(weight).astype(_MXU_DTYPE)            # (in_dim, out_dim)
    gamma2 = gamma.reshape(1, out_dim).astype(jnp.float32)
    beta2 = beta.reshape(1, out_dim).astype(jnp.float32)

    tile_n = _pick_row_tile(n, in_dim, out_dim, _VMEM_LIMIT)
    inv_n = 1.0 / n
    matmul_flops = 2 * n * in_dim * out_dim

    # ---------- Fused single-kernel path (output fits in VMEM) ----------
    fused_out_bytes = _round_up(n, tile_n) * out_dim * 4
    pipeline_bytes = 2 * tile_n * in_dim * 4 + in_dim * out_dim * 2 + 6 * out_dim * 4
    if fused_out_bytes + pipeline_bytes <= (3 * _VMEM_LIMIT) // 4:
        num_tiles = pl.cdiv(n, tile_n)
        n_pad = num_tiles * tile_n
        x_p = x if n_pad == n else jnp.pad(x, ((0, n_pad - n), (0, 0)))
        # Zero-padded rows contribute exactly zero to sum / sum-of-squares
        # (no bias); inv_n uses the true N, padded output rows are sliced off.

        out = pl.pallas_call(
            functools.partial(_fused_kernel, inv_n=inv_n, tile_n=tile_n),
            out_shape=jax.ShapeDtypeStruct((n_pad, out_dim), jnp.float32),
            grid=(num_tiles,),
            in_specs=[
                pl.BlockSpec((tile_n, in_dim), lambda i: (i, 0)),
                pl.BlockSpec((in_dim, out_dim), lambda i: (0, 0)),
                pl.BlockSpec((1, out_dim), lambda i: (0, 0)),
                pl.BlockSpec((1, out_dim), lambda i: (0, 0)),
            ],
            out_specs=pl.BlockSpec((n_pad, out_dim), lambda i: (0, 0)),
            scratch_shapes=[pltpu.VMEM((1, out_dim), jnp.float32),
                            pltpu.VMEM((1, out_dim), jnp.float32)],
            compiler_params=pltpu.CompilerParams(
                dimension_semantics=("arbitrary",),
                vmem_limit_bytes=_VMEM_LIMIT),
            cost_estimate=pl.CostEstimate(
                flops=matmul_flops + 6 * n * out_dim,
                transcendentals=out_dim,
                bytes_accessed=(n * in_dim * 4 + in_dim * out_dim * 2
                                + n * out_dim * 4 + 4 * out_dim * 4)),
        )(x_p, wt, gamma2, beta2)
        return out[:n] if n_pad != n else out

    # ---------- Two-pass fallback for very large N ----------
    tiles = pl.cdiv(n, tile_n)
    tiles_per_split = pl.cdiv(tiles, _STATS_SPLIT)
    num_tiles = _STATS_SPLIT * tiles_per_split
    n_pad = num_tiles * tile_n
    x_p = x if n_pad == n else jnp.pad(x, ((0, n_pad - n), (0, 0)))

    # Pass 1: stats sharded over the leading "parallel" axis (v7x megacore).
    psum, psumsq = pl.pallas_call(
        _stats_kernel,
        out_shape=(jax.ShapeDtypeStruct((_STATS_SPLIT, out_dim), jnp.float32),
                   jax.ShapeDtypeStruct((_STATS_SPLIT, out_dim), jnp.float32)),
        grid=(_STATS_SPLIT, tiles_per_split),
        in_specs=[
            pl.BlockSpec((tile_n, in_dim),
                         lambda c, i: (c * tiles_per_split + i, 0)),
            pl.BlockSpec((in_dim, out_dim), lambda c, i: (0, 0)),
        ],
        out_specs=(pl.BlockSpec((1, out_dim), lambda c, i: (c, 0)),
                   pl.BlockSpec((1, out_dim), lambda c, i: (c, 0))),
        compiler_params=pltpu.CompilerParams(
            dimension_semantics=("parallel", "arbitrary"),
            vmem_limit_bytes=_VMEM_LIMIT),
        cost_estimate=pl.CostEstimate(
            flops=matmul_flops + 3 * n * out_dim,
            transcendentals=0,
            bytes_accessed=(n * in_dim * 4 + in_dim * out_dim * 2
                            + 2 * _STATS_SPLIT * out_dim * 4)),
    )(x_p, wt)

    # Hoisted (tiny) scale/shift computation: done once, not per grid step.
    mean = jnp.sum(psum, axis=0, keepdims=True) * inv_n
    var = jnp.maximum(
        jnp.sum(psumsq, axis=0, keepdims=True) * inv_n - mean * mean, 0.0)
    scale = jax.lax.rsqrt(var + _EPS) * gamma2
    shift = beta2 - mean * scale

    # Pass 2: independent row tiles, pure parallel normalize + ReLU.
    out = pl.pallas_call(
        _normalize_kernel,
        out_shape=jax.ShapeDtypeStruct((n_pad, out_dim), jnp.float32),
        grid=(num_tiles,),
        in_specs=[
            pl.BlockSpec((tile_n, in_dim), lambda i: (i, 0)),
            pl.BlockSpec((in_dim, out_dim), lambda i: (0, 0)),
            pl.BlockSpec((1, out_dim), lambda i: (0, 0)),
            pl.BlockSpec((1, out_dim), lambda i: (0, 0)),
        ],
        out_specs=pl.BlockSpec((tile_n, out_dim), lambda i: (i, 0)),
        compiler_params=pltpu.CompilerParams(
            dimension_semantics=("parallel",),
            vmem_limit_bytes=_VMEM_LIMIT),
        cost_estimate=pl.CostEstimate(
            flops=matmul_flops + 3 * n * out_dim,
            transcendentals=0,
            bytes_accessed=(n * in_dim * 4 + in_dim * out_dim * 2
                            + n * out_dim * 4 + 2 * out_dim * 4)),
    )(x_p, wt, scale, shift)
    return out[:n] if n_pad != n else out


if __name__ == "__main__":
    batch, in_dim, output_dim = 8, 32, 16

    key = jax.random.PRNGKey(0)
    k_x, k_w, k_b = jax.random.split(key, 3)

    x = jax.random.normal(k_x, (batch, in_dim), dtype=jnp.float32)

    # PyTorch-like Linear init: uniform(-1/sqrt(in_dim), 1/sqrt(in_dim)).
    bound = 1.0 / math.sqrt(in_dim)
    weight = jax.random.uniform(k_w, (output_dim, in_dim), jnp.float32,
                                -bound, bound)
    bias = jax.random.uniform(k_b, (output_dim,), jnp.float32, -bound, bound)
    gamma = jnp.ones((output_dim,), jnp.float32)   # BatchNorm1d weight init
    beta = jnp.zeros((output_dim,), jnp.float32)   # BatchNorm1d bias init

    out = reduce_node_attribute_dimensions(x, weight, bias, gamma, beta)
    jax.block_until_ready(out)

    # Reference with the same bf16 MXU-operand rounding, f32 BN math.
    xb = x.astype(jnp.bfloat16).astype(jnp.float32)
    wb = weight.astype(jnp.bfloat16).astype(jnp.float32)
    y = xb @ wb.T + bias
    m = y.mean(axis=0, keepdims=True)
    v = ((y - m) ** 2).mean(axis=0, keepdims=True)
    ref = jnp.maximum((y - m) * jax.lax.rsqrt(v + _EPS) * gamma + beta, 0.0)

    assert out.shape == (batch, output_dim)
    assert jnp.allclose(out, ref, atol=1e-3, rtol=1e-3), (
        float(jnp.max(jnp.abs(out - ref))))

    print("KERNEL_OK")
</pallas_src>

<mosaic_0001>
module attributes {stable_mosaic.version = 11 : i64} {
  func.func @_fused_kernel(%arg0: i32, %arg1: memref<8x32xf32, #tpu.memory_space<vmem>>, %arg2: memref<32x16xbf16, #tpu.memory_space<vmem>>, %arg3: memref<1x16xf32, #tpu.memory_space<vmem>>, %arg4: memref<1x16xf32, #tpu.memory_space<vmem>>, %arg5: memref<8x16xf32, #tpu.memory_space<vmem>>, %arg6: memref<1x16xf32, #tpu.memory_space<vmem>>, %arg7: memref<1x16xf32, #tpu.memory_space<vmem>>) attributes {dimension_semantics = [#tpu.dimension_semantics<arbitrary>], iteration_bounds = array<i64: 1>, scalar_prefetch = 0 : i64, scratch_operands = 2 : i64, tpu.core_type = #tpu.core_type<tc>, window_params = [{transform_indices = @transform_0, window_bounds = array<i64: 8, 32>}, {pipeline_mode = #tpu.pipeline_mode<synchronous>, transform_indices = @transform_1, window_bounds = array<i64: 32, 16>}, {pipeline_mode = #tpu.pipeline_mode<synchronous>, transform_indices = @transform_2, window_bounds = array<i64: 1, 16>}, {pipeline_mode = #tpu.pipeline_mode<synchronous>, transform_indices = @transform_3, window_bounds = array<i64: 1, 16>}, {pipeline_mode = #tpu.pipeline_mode<synchronous>, transform_indices = @transform_4, window_bounds = array<i64: 8, 16>}]} {
    %c0_i32 = arith.constant 0 : i32
    %0 = arith.cmpi eq, %arg0, %c0_i32 : i32
    %1 = arith.extui %0 : i1 to i32
    %c0_i32_0 = arith.constant 0 : i32
    %2 = arith.cmpi ne, %1, %c0_i32_0 : i32
    scf.if %2 {
      %cst_17 = arith.constant 0.000000e+00 : f32
      %25 = vector.broadcast %cst_17 : f32 to vector<1x16xf32>
      %c0_18 = arith.constant 0 : index
      %c0_19 = arith.constant 0 : index
      %26 = vector.load %arg6[%c0_18, %c0_19] : memref<1x16xf32, #tpu.memory_space<vmem>>, vector<1x16xf32>
      tpu.vector_store %arg6[%c0_18, %c0_19], %25 {strides = array<i32>} : memref<1x16xf32, #tpu.memory_space<vmem>>, vector<1x16xf32>,
      %cst_20 = arith.constant 0.000000e+00 : f32
      %27 = vector.broadcast %cst_20 : f32 to vector<1x16xf32>
      %c0_21 = arith.constant 0 : index
      %c0_22 = arith.constant 0 : index
      %28 = vector.load %arg7[%c0_21, %c0_22] : memref<1x16xf32, #tpu.memory_space<vmem>>, vector<1x16xf32>
      tpu.vector_store %arg7[%c0_21, %c0_22], %27 {strides = array<i32>} : memref<1x16xf32, #tpu.memory_space<vmem>>, vector<1x16xf32>,
    } else {
    }
    %c0 = arith.constant 0 : index
    %c0_1 = arith.constant 0 : index
    %3 = vector.load %arg1[%c0, %c0_1] : memref<8x32xf32, #tpu.memory_space<vmem>>, vector<8x32xf32>
    %4 = arith.truncf %3 : vector<8x32xf32> to vector<8x32xbf16>
    %c0_2 = arith.constant 0 : index
    %c0_3 = arith.constant 0 : index
    %5 = vector.load %arg2[%c0_2, %c0_3] : memref<32x16xbf16, #tpu.memory_space<vmem>>, vector<32x16xbf16>
    %cst = arith.constant dense<0.000000e+00> : vector<8x16xf32>
    %6 = tpu.matmul %4, %5, %cst {dimension_numbers = #tpu.dot_dimension_numbers<[1], [0], [0], [1], [0, 0, 1, 1], [], []>} : vector<8x32xbf16>, vector<32x16xbf16>, vector<8x16xf32> -> vector<8x16xf32>
    %c0_4 = arith.constant 0 : index
    %c0_5 = arith.constant 0 : index
    %7 = vector.load %arg6[%c0_4, %c0_5] : memref<1x16xf32, #tpu.memory_space<vmem>>, vector<1x16xf32>
    %cst_6 = arith.constant dense<0.000000e+00> : vector<16xf32>
    %8 = vector.multi_reduction <add>, %6, %cst_6 [0] : vector<8x16xf32> to vector<16xf32>
    %9 = vector.shape_cast %8 : vector<16xf32> to vector<1x16xf32>
    %10 = arith.addf %7, %9 : vector<1x16xf32>
    %c0_7 = arith.constant 0 : index
    %c0_8 = arith.constant 0 : index
    %11 = vector.load %arg6[%c0_7, %c0_8] : memref<1x16xf32, #tpu.memory_space<vmem>>, vector<1x16xf32>
    tpu.vector_store %arg6[%c0_7, %c0_8], %10 {strides = array<i32>} : memref<1x16xf32, #tpu.memory_space<vmem>>, vector<1x16xf32>,
    %c0_9 = arith.constant 0 : index
    %c0_10 = arith.constant 0 : index
    %12 = vector.load %arg7[%c0_9, %c0_10] : memref<1x16xf32, #tpu.memory_space<vmem>>, vector<1x16xf32>
    %13 = arith.mulf %6, %6 : vector<8x16xf32>
    %cst_11 = arith.constant dense<0.000000e+00> : vector<16xf32>
    %14 = vector.multi_reduction <add>, %13, %cst_11 [0] : vector<8x16xf32> to vector<16xf32>
    %15 = vector.shape_cast %14 : vector<16xf32> to vector<1x16xf32>
    %16 = arith.addf %12, %15 : vector<1x16xf32>
    %c0_12 = arith.constant 0 : index
    %c0_13 = arith.constant 0 : index
    %17 = vector.load %arg7[%c0_12, %c0_13] : memref<1x16xf32, #tpu.memory_space<vmem>>, vector<1x16xf32>
    tpu.vector_store %arg7[%c0_12, %c0_13], %16 {strides = array<i32>} : memref<1x16xf32, #tpu.memory_space<vmem>>, vector<1x16xf32>,
    %c8_i32 = arith.constant 8 : i32
    %18 = arith.muli %arg0, %c8_i32 : i32
    %19 = tpu.assume_multiple %18, 8 : i32
    %20 = arith.index_cast %19 : i32 to index
    %c0_14 = arith.constant 0 : index
    %21 = vector.load %arg5[%20, %c0_14] : memref<8x16xf32, #tpu.memory_space<vmem>>, vector<8x16xf32>
    tpu.vector_store %arg5[%20, %c0_14], %6 {strides = array<i32>} : memref<8x16xf32, #tpu.memory_space<vmem>>, vector<8x16xf32>,
    %c0_i32_15 = arith.constant 0 : i32
    %22 = arith.cmpi eq, %arg0, %c0_i32_15 : i32
    %23 = arith.extui %22 : i1 to i32
    %c0_i32_16 = arith.constant 0 : i32
    %24 = arith.cmpi ne, %23, %c0_i32_16 : i32
    scf.if %24 {
      %c0_17 = arith.constant 0 : index
      %c0_18 = arith.constant 0 : index
      %25 = vector.load %arg6[%c0_17, %c0_18] : memref<1x16xf32, #tpu.memory_space<vmem>>, vector<1x16xf32>
      %cst_19 = arith.constant 1.250000e-01 : f32
      %26 = vector.broadcast %cst_19 : f32 to vector<1x16xf32>
      %27 = arith.mulf %25, %26 : vector<1x16xf32>
      %c0_20 = arith.constant 0 : index
      %c0_21 = arith.constant 0 : index
      %28 = vector.load %arg7[%c0_20, %c0_21] : memref<1x16xf32, #tpu.memory_space<vmem>>, vector<1x16xf32>
      %cst_22 = arith.constant 1.250000e-01 : f32
      %29 = vector.broadcast %cst_22 : f32 to vector<1x16xf32>
      %30 = arith.mulf %28, %29 : vector<1x16xf32>
      %31 = arith.mulf %27, %27 : vector<1x16xf32>
      %32 = arith.subf %30, %31 : vector<1x16xf32>
      %cst_23 = arith.constant 0.000000e+00 : f32
      %33 = vector.broadcast %cst_23 : f32 to vector<1x16xf32>
      %34 = arith.maximumf %32, %33 : vector<1x16xf32>
      %cst_24 = arith.constant 9.99999974E-6 : f32
      %35 = vector.broadcast %cst_24 : f32 to vector<1x16xf32>
      %36 = arith.addf %34, %35 : vector<1x16xf32>
      %37 = math.rsqrt %36 : vector<1x16xf32>
      %c0_25 = arith.constant 0 : index
      %c0_26 = arith.constant 0 : index
      %38 = vector.load %arg3[%c0_25, %c0_26] : memref<1x16xf32, #tpu.memory_space<vmem>>, vector<1x16xf32>
      %39 = arith.mulf %37, %38 : vector<1x16xf32>
      %c0_27 = arith.constant 0 : index
      %c0_28 = arith.constant 0 : index
      %40 = vector.load %arg4[%c0_27, %c0_28] : memref<1x16xf32, #tpu.memory_space<vmem>>, vector<1x16xf32>
      %41 = arith.mulf %27, %39 : vector<1x16xf32>
      %42 = arith.subf %40, %41 : vector<1x16xf32>
      %c0_29 = arith.constant 0 : index
      %c0_30 = arith.constant 0 : index
      %43 = vector.load %arg5[%c0_29, %c0_30] : memref<8x16xf32, #tpu.memory_space<vmem>>, vector<8x16xf32>
      %44 = vector.broadcast %39 : vector<1x16xf32> to vector<8x16xf32>
      %45 = arith.mulf %43, %44 : vector<8x16xf32>
      %46 = vector.broadcast %42 : vector<1x16xf32> to vector<8x16xf32>
      %47 = arith.addf %45, %46 : vector<8x16xf32>
      %cst_31 = arith.constant 0.000000e+00 : f32
      %48 = vector.broadcast %cst_31 : f32 to vector<8x16xf32>
      %49 = arith.maximumf %47, %48 : vector<8x16xf32>
      %c0_32 = arith.constant 0 : index
      %c0_33 = arith.constant 0 : index
      %50 = vector.load %arg5[%c0_32, %c0_33] : memref<8x16xf32, #tpu.memory_space<vmem>>, vector<8x16xf32>
      tpu.vector_store %arg5[%c0_32, %c0_33], %49 {strides = array<i32>} : memref<8x16xf32, #tpu.memory_space<vmem>>, vector<8x16xf32>,
    } else {
    }
    return
  }
  func.func @transform_0(%arg0: i32) -> (i32, i32) {
    %c0_i32 = arith.constant 0 : i32
    %c0_i32_0 = arith.constant 0 : i32
    return %arg0, %c0_i32 : i32, i32
  }
  func.func @transform_1(%arg0: i32) -> (i32, i32) {
    %c0_i32 = arith.constant 0 : i32
    %c0_i32_0 = arith.constant 0 : i32
    %c0_i32_1 = arith.constant 0 : i32
    return %c0_i32, %c0_i32_0 : i32, i32
  }
  func.func @transform_2(%arg0: i32) -> (i32, i32) {
    %c0_i32 = arith.constant 0 : i32
    %c0_i32_0 = arith.constant 0 : i32
    %c0_i32_1 = arith.constant 0 : i32
    return %c0_i32, %c0_i32_0 : i32, i32
  }
  func.func @transform_3(%arg0: i32) -> (i32, i32) {
    %c0_i32 = arith.constant 0 : i32
    %c0_i32_0 = arith.constant 0 : i32
    %c0_i32_1 = arith.constant 0 : i32
    return %c0_i32, %c0_i32_0 : i32, i32
  }
  func.func @transform_4(%arg0: i32) -> (i32, i32) {
    %c0_i32 = arith.constant 0 : i32
    %c0_i32_0 = arith.constant 0 : i32
    %c0_i32_1 = arith.constant 0 : i32
    return %c0_i32, %c0_i32_0 : i32, i32
  }
}

</mosaic_0001>

<llo_original>
// kernel: tpu_custom_call.1
$region0: #{tpu_custom_call.1}
  #allocation0 [shape = 'u32[]', space=smem, size = 0x4, offset = 0x4, fixed_abs, tag = 'smem constant byte address 0x4 - core index']
  #allocation1 [shape = 'u32[144,128]{1,0:T(1,128)}', space=vmem, size = 0x12000, scoped, tag = 'internal scratch']
  #allocation2 [shape = 'f32[1,16]{1,0:T(1,128)}', space=vmem, size = 0x200, scoped, tag = 'scratch operand']
  #allocation3 [shape = 'f32[1,16]{1,0:T(1,128)}', space=vmem, size = 0x200, scoped, tag = 'scratch operand']
  %s0 = inlined_call_operand.vmem [shape: f32[8,32], index: 0, kind: input, shape index: {}]
  %s1 = inlined_call_operand.vmem [shape: bf16[32,16], index: 1, kind: input, shape index: {}]
  %s2 = inlined_call_operand.vmem [shape: f32[1,16], index: 2, kind: input, shape index: {}]
  %s3 = inlined_call_operand.vmem [shape: f32[1,16], index: 3, kind: input, shape index: {}]
  %s4 = inlined_call_operand.hbm [shape: f32[8,16], index: 4, kind: output, shape index: {}]
  %s5 = sld [smem:[#allocation0]]
  $region34: #{tpu_custom_call.1} parent=0
    _
  %s7 = ssub.s32 1, %s5
  %s8 = scalar_select 0, %s7, %s5
  $region1: #{tpu_custom_call.1} parent=0
    #allocation4 [shape = 'u8[4096]{0}', space=vmem, size = 0x1000, scoped, tag = 'output window, operand 0, single buffered']
    #allocation5 [shape = 's32[1]{0}', space=sflag, size = 0x4, scoped, tag = 'scoped memory for tpu_custom_call.1']
    %9 = vsyncpa [#allocation5], 0
    // Predicated region
    $region2: #{tpu_custom_call.1} parent=1 // pred_check
      _
    $region3: #{tpu_custom_call.1} parent=1 // pred_check_branch
      %11 = sbr.rel (0) target = $region5
    $region4: #{tpu_custom_call.1} parent=1 // pred_region
      _
    $region5: #{tpu_custom_call.1} parent=1 // pred_fallthru
      _
    // Predicated region
    $region6: #{tpu_custom_call.1} parent=1 // pred_check
      _
    $region7: #{tpu_custom_call.1} parent=1 // pred_check_branch
      %13 = sbr.rel (0) target = $region9
    $region8: #{tpu_custom_call.1} parent=1 // pred_region
      _
    $region9: #{tpu_custom_call.1} parent=1 // pred_fallthru
      _
    // Predicated region
    $region10: #{tpu_custom_call.1} parent=1 // pred_check
      _
    $region11: #{tpu_custom_call.1} parent=1 // pred_check_branch
      %15 = sbr.rel (0) target = $region13
    $region12: #{tpu_custom_call.1} parent=1 // pred_region
      _
    $region13: #{tpu_custom_call.1} parent=1 // pred_fallthru
      _
    // Predicated region
    $region14: #{tpu_custom_call.1} parent=1 // pred_check
      _
    $region15: #{tpu_custom_call.1} parent=1 // pred_check_branch
      %17 = sbr.rel (0) target = $region17
    $region16: #{tpu_custom_call.1} parent=1 // pred_region
      _
    $region17: #{tpu_custom_call.1} parent=1 // pred_fallthru
      _
    %p19 = scmp.eq.s32.totalorder 0, 0
    // Predicated region
    $region18: #{tpu_custom_call.1} parent=1 // pred_check
      %p20 = pneg %p19
    $region19: #{tpu_custom_call.1} parent=1 // pred_check_branch
      %22 = sbr.rel (%p20) target = $region21
    $region20: #{tpu_custom_call.1} parent=1 // pred_region
      %vm23 = vcmask 122880
      %24 = vst.msk [vmem:[#allocation2] sm:$0x1] %vm23, 0.0
      %25 = vst.msk [vmem:[#allocation3] sm:$0x1] %vm23, 0.0
    $region21: #{tpu_custom_call.1} parent=1 // pred_fallthru
      _
    %v26 = vld [vmem:[%s0] sm:$0xff]
    %v27 = vpack.c.bf16 %v26, %v26
    %v28 = vld [vmem:[%s1] sm:$0xf]
    %v29 = vld [vmem:[%s1 + $0x4] sm:$0xf]
    %v30 = vld [vmem:[%s1 + $0x8] sm:$0xf]
    %v31 = vld [vmem:[%s1 + $0xc] sm:$0xf]
    %v36 = vunpack.c.l.b16 %v28
    %v37 = vunpack.c.l.b16 %v29
    %v38 = vunpack.c.l.b16 %v30
    %v39 = vunpack.c.l.b16 %v31
    %v40 = vpack.c.b16 %v37, %v36
    %v41 = vpack.c.b16 %v39, %v38
    %vm44 = vcmask 261120
    %v46 = vsel %vm44, %v27, 0
    %48 = vmatprep.subr.bf16.mxu0 0
    %49 = vmatpush1.bf16.msra.mxu0 0
    %50 = vmatprep.subr.bf16.mxu0 0
    %51 = vmatpush1.bf16.msra.mxu0 0
    %52 = vmatprep.subr.bf16.mxu0 0
    %53 = vmatpush1.bf16.msra.mxu0 0
    %54 = vmatprep.subr.bf16.mxu0 0
    %55 = vmatpush1.bf16.msra.mxu0 0
    %56 = vmatprep.subr.bf16.mxu0 0
    %57 = vmatpush1.bf16.msra.mxu0 0
    %58 = vmatprep.subr.bf16.mxu0 0
    %59 = vmatpush1.bf16.msra.mxu0 0
    %60 = vmatprep.subr.bf16.mxu0 0
    %61 = vmatpush1.bf16.msra.mxu0 %v41
    %62 = vmatprep.subr.bf16.mxu0 0
    %63 = vmatpush1.bf16.msra.mxu0 %v40
    %64 = vmatprep.subr.bf16.mxu0 0
    %65 = vmatpush2.bf16.msra.mxu0 0
    %66 = vmatprep.subr.bf16.mxu0 0
    %67 = vmatpush2.bf16.msra.mxu0 0
    %68 = vmatprep.subr.bf16.mxu0 0
    %69 = vmatpush2.bf16.msra.mxu0 0
    %70 = vmatprep.subr.bf16.mxu0 0
    %71 = vmatpush2.bf16.msra.mxu0 0
    %72 = vmatprep.subr.bf16.mxu0 0
    %73 = vmatpush2.bf16.msra.mxu0 0
    %74 = vmatprep.subr.bf16.mxu0 0
    %75 = vmatpush2.bf16.msra.mxu0 0
    %76 = vmatprep.subr.bf16.mxu0 0
    %77 = vmatpush2.bf16.msra.mxu0 0
    %78 = vmatprep.subr.bf16.mxu0 0
    %79 = vmatpush2.bf16.msra.mxu0 0
    %80 = vmatprep.mubr.bf16.mxu0 0
    %81 = vmatmul.mubr.bf16.gmra.mxu0 %v46
    %v82 = vpop.f32.mrf.mxu0
    %v83 = vadd.f32 0.0, %v82
    %v84 = vpop.f32.mrf.mxu0
    %v85 = vpop.f32.mrf.mxu0
    %v86 = vpop.f32.mrf.mxu0
    %87 = vdwg.mxu0
    %v88 = vld [vmem:[#allocation2] sm:$0x1]
    %vm89 = vcmask 130048
    %v90 = vsel %vm89, %v83, 0.0
    %v91 = vrot.slane %v90, 4
    %v92 = vadd.f32 %v90, %v91
    %v93 = vrot.slane %v92, 2
    %v94 = vadd.f32 %v92, %v93
    %v95 = vrot.slane %v94, 1
    %v96 = vadd.f32 %v94, %v95
    %v97 = vadd.f32 %v88, %v96
    %vm98 = vcmask 122880
    %99 = vst.msk [vmem:[#allocation2] sm:$0x1] %vm98, %v97
    %v100 = vld [vmem:[#allocation3] sm:$0x1]
    %v101 = vmul.f32 %v83, %v83
    %v102 = vsel %vm89, %v101, 0.0
    %v103 = vrot.slane %v102, 4
    %v104 = vadd.f32 %v102, %v103
    %v105 = vrot.slane %v104, 2
    %v106 = vadd.f32 %v104, %v105
    %v107 = vrot.slane %v106, 1
    %v108 = vadd.f32 %v106, %v107
    %v109 = vadd.f32 %v100, %v108
    %110 = vst.msk [vmem:[#allocation3] sm:$0x1] %vm98, %v109
    %s111 = smul.u32 0, 8
    %s112 = scalar_lea.vmem [#allocation4], %s111
    %113 = vst.msk [vmem:[%s112] sm:$0xff] %vm89, %v83
    // Predicated region
    $region22: #{tpu_custom_call.1} parent=1 // pred_check
      %p114 = pneg %p19
    $region23: #{tpu_custom_call.1} parent=1 // pred_check_branch
      %116 = sbr.rel (%p114) target = $region25
    $region24: #{tpu_custom_call.1} parent=1 // pred_region
      %v117 = vld [vmem:[#allocation2] sm:$0x1]
      %v118 = vmul.f32 %v117, 0.125
      %v119 = vld [vmem:[#allocation3] sm:$0x1]
      %v120 = vmul.f32 %v119, 0.125
      %v121 = vmul.f32 %v118, %v118
      %v122 = vsub.f32 %v120, %v121
      %v123 = vmax.f32 %v122, 0.0
      %v124 = vadd.f32 %v123, 1e-05
      %v125 = vrsqrt.pop %v124
      %v126 = vld [vmem:[%s2] sm:$0x1]
      %v127 = vmul.f32 %v125, %v126
      %v128 = vld [vmem:[%s3] sm:$0x1]
      %v129 = vmul.f32 %v118, %v127
      %v130 = vsub.f32 %v128, %v129
      %v131 = vld [vmem:[#allocation4] sm:$0xff]
      %v133 = vlaneseq
      %v134 = vshrl.u32 %v133, 7
      %v135 = vsub.s32 0, %v134
      %v136 = vrot.slane %v127, %v135
      %v138 = vmul.f32 %v131, %v136
      %v140 = vlaneseq
      %v141 = vshrl.u32 %v140, 7
      %v142 = vsub.s32 0, %v141
      %v143 = vrot.slane %v130, %v142
      %v145 = vadd.f32 %v138, %v143
      %v146 = vmax.f32 %v145, 0.0
      %147 = vst.msk [vmem:[#allocation4] sm:$0xff] %vm89, %v146
    $region25: #{tpu_custom_call.1} parent=1 // pred_fallthru
      _
    // Predicated region
    $region26: #{tpu_custom_call.1} parent=1 // pred_check
      _
    $region27: #{tpu_custom_call.1} parent=1 // pred_check_branch
      %149 = sbr.rel (0) target = $region29
    $region28: #{tpu_custom_call.1} parent=1 // pred_region
      %s151 = ssub.s32 128, 128
      %152 = vsyncadd [#allocation5], %s151
      %s154 = sshll.u32 [#allocation4], 4
      %s155 = int_to_ptr.vmem [resolvable:$true] %s154
      %157 = dma.vmem_to_hbm [thread:$0]  %s155, 128, %s4, [#allocation5]
    $region29: #{tpu_custom_call.1} parent=1 // pred_fallthru
      _
    // Predicated region
    $region30: #{tpu_custom_call.1} parent=1 // pred_check
      _
    $region31: #{tpu_custom_call.1} parent=1 // pred_check_branch
      %159 = sbr.rel (0) target = $region33
    $region32: #{tpu_custom_call.1} parent=1 // pred_region
      %160 = dma.done [#allocation5], 128
    $region33: #{tpu_custom_call.1} parent=1 // pred_fallthru
      _
    %161 = vsyncpa [#allocation5], 1

</llo_original>
